<compile_context>
chip_gen: v6e
topology: v6e:2x2x1
jax: 0.10.0
libtpu: 0.0.40
codegen_flags: <defaults>
</compile_context>

<pallas_src>
import functools

import jax
import jax.numpy as jnp
from jax.experimental import pallas as pl
from jax.experimental.pallas import tpu as pltpu


# --------------------------------------------------------------------------
# Kernels
# --------------------------------------------------------------------------
def _ffn_resident_kernel(x_ref, w1_ref, w3_ref, w2_ref, o_ref):
    """Resident-weights path: whole hidden dim in one shot, no accumulator.

    x_ref : (TM, D)   row tile of the input (bf16)
    w1_ref: (D, H)    full l1 weight (in x out layout, bf16, resident)
    w3_ref: (D, H)    full l3 weight
    w2_ref: (H, D)    full l2 weight
    o_ref : (TM, D)   output tile
    """
    x = x_ref[...]
    a = jnp.dot(x, w1_ref[...], preferred_element_type=jnp.float32)
    b = jnp.dot(x, w3_ref[...], preferred_element_type=jnp.float32)
    # SiLU in f32; exp -> EUP, reciprocal(approx) -> EUP (MXU slot stays busy).
    sig = pl.reciprocal(1.0 + jnp.exp(-a), approx=True)
    hdn = (a * sig) * b
    o_ref[...] = jnp.dot(
        hdn.astype(w2_ref.dtype), w2_ref[...],
        preferred_element_type=jnp.float32,
    ).astype(o_ref.dtype)


def _ffn_tiled_kernel(x_ref, w1_ref, w3_ref, w2_ref, o_ref, acc_ref, *,
                      hidden_total, hidden_tile, mask_hidden):
    """Tiled-hidden path: reduce over hidden tiles into a resident f32 acc.

    x_ref : (TM, TH_in=D)   row tile of the input (bf16)
    w1_ref: (D, TH)         column tile of l1 weight
    w3_ref: (D, TH)         column tile of l3 weight
    w2_ref: (TH, D)         row tile of l2 weight
    o_ref : (TM, D)         output tile (resident across the hidden axis)
    acc_ref: (TM, D)        f32 accumulator scratch
    """
    j = pl.program_id(1)

    @pl.when(j == 0)
    def _():
        acc_ref[...] = jnp.zeros_like(acc_ref)

    x = x_ref[...]
    a = jnp.dot(x, w1_ref[...], preferred_element_type=jnp.float32)
    b = jnp.dot(x, w3_ref[...], preferred_element_type=jnp.float32)
    sig = pl.reciprocal(1.0 + jnp.exp(-a), approx=True)
    hdn = (a * sig) * b

    w2 = w2_ref[...]
    if mask_hidden:
        # Ragged hidden tail: zero both the padded hidden columns of the
        # activation and the padded rows of w2 so OOB garbage cannot leak.
        base = j * hidden_tile
        col = jax.lax.broadcasted_iota(jnp.int32, hdn.shape, 1)
        hdn = jnp.where(base + col < hidden_total, hdn, 0.0)
        row = jax.lax.broadcasted_iota(jnp.int32, w2.shape, 0)
        w2 = jnp.where(base + row < hidden_total, w2, jnp.zeros_like(w2))

    acc_ref[...] += jnp.dot(
        hdn.astype(w2.dtype), w2, preferred_element_type=jnp.float32
    )

    @pl.when(j == pl.num_programs(1) - 1)
    def _():
        o_ref[...] = acc_ref[...].astype(o_ref.dtype)


# --------------------------------------------------------------------------
# Wrapper
# --------------------------------------------------------------------------
def _round_up(n, m):
    return ((n + m - 1) // m) * m


def _vmem_budget_bytes():
    # 3/4 of physical VMEM: ~48 MiB on v7x (64 MiB/TC), ~96 MiB on v5e/v6e.
    cap = 64 << 20  # conservative fallback valid on every chip
    try:
        cap = int(pltpu.get_tpu_info().vmem_capacity_bytes)
    except Exception:
        pass
    return (cap * 3) // 4


def feedforward(x, w1, w3, w2, *, row_tile=512, hidden_tile=512,
                compute_dtype=jnp.bfloat16, force_tiled=False):
    """FeedForward forward pass: l2(silu(l1(x)) * l3(x)).

    Weights are stored as (in_features, out_features), i.e. the transpose of
    the PyTorch nn.Linear.weight layout, so the kernel computes x @ w.
    MXU operands are fed in `compute_dtype` (bf16) with f32 accumulation; the
    output keeps x.dtype.
    """
    orig_shape = x.shape
    out_dtype = x.dtype
    d = orig_shape[-1]
    h = w1.shape[1]
    assert w1.shape == (d, h) and w3.shape == (d, h) and w2.shape == (h, d)

    x2d = x.reshape(-1, d)
    rows = x2d.shape[0]

    cbytes = jnp.dtype(compute_dtype).itemsize
    obytes = jnp.dtype(out_dtype).itemsize
    rq = 16 if cbytes == 2 else 8  # sublane quantum (bf16 packs 2 rows)

    # Feed the MXU narrow operands (weights in bf16 halve HBM traffic too).
    xc = x2d.astype(compute_dtype)
    w1c = w1.astype(compute_dtype)
    w3c = w3.astype(compute_dtype)
    w2c = w2.astype(compute_dtype)

    budget = _vmem_budget_bytes()

    # ---- row tile ----
    tm = min(row_tile, _round_up(rows, rq))
    # Guarantee >=2 row tiles when there is enough work so the "parallel" row
    # axis can shard across both TensorCores on v7x.
    if pl.cdiv(rows, tm) < 2 and rows >= 2 * rq:
        tm = _round_up(pl.cdiv(rows, 2), rq)
    n_row_tiles = pl.cdiv(rows, tm)

    def per_row_tile_bytes(tm_, th_, with_acc):
        b = 2 * tm_ * d * cbytes          # x tiles (double-buffered)
        b += 2 * tm_ * d * obytes         # out tiles (double-buffered)
        b += 2 * tm_ * th_ * 4            # f32 hidden intermediates
        if with_acc:
            b += tm_ * d * 4              # f32 accumulator scratch
        return b

    cost = pl.CostEstimate(
        flops=6 * rows * d * h,
        transcendentals=rows * h,
        bytes_accessed=rows * d * cbytes + 3 * d * h * cbytes + rows * d * obytes,
    )

    # ---- resident-weights path: all three weights live in VMEM across every
    # row tile (single DMA each), no hidden reduction axis, no accumulator ----
    resident_bytes = 2 * 3 * d * h * cbytes + per_row_tile_bytes(tm, h, False)
    use_resident = (not force_tiled) and resident_bytes <= budget

    if use_resident:
        out2d = pl.pallas_call(
            _ffn_resident_kernel,
            out_shape=jax.ShapeDtypeStruct((rows, d), out_dtype),
            grid_spec=pltpu.PrefetchScalarGridSpec(
                num_scalar_prefetch=0,
                grid=(n_row_tiles,),
                in_specs=[
                    pl.BlockSpec((tm, d), lambda i: (i, 0)),   # x rows
                    pl.BlockSpec((d, h), lambda i: (0, 0)),    # w1 (resident)
                    pl.BlockSpec((d, h), lambda i: (0, 0)),    # w3 (resident)
                    pl.BlockSpec((h, d), lambda i: (0, 0)),    # w2 (resident)
                ],
                out_specs=pl.BlockSpec((tm, d), lambda i: (i, 0)),
            ),
            compiler_params=pltpu.CompilerParams(
                dimension_semantics=("parallel",),
                vmem_limit_bytes=budget,
            ),
            cost_estimate=cost,
        )(xc, w1c, w3c, w2c)
        return out2d.reshape(orig_shape)

    # ---- tiled-hidden path: stream weight tiles, reduce over hidden axis ----
    th = min(hidden_tile, _round_up(h, 128))
    while th > 128:
        tile_bytes = (2 * (2 * d * th + th * d) * cbytes
                      + per_row_tile_bytes(tm, th, True))
        if tile_bytes <= budget:
            break
        th -= 128
    n_hidden_tiles = pl.cdiv(h, th)
    mask_hidden = (h % th) != 0

    kernel = functools.partial(
        _ffn_tiled_kernel,
        hidden_total=h, hidden_tile=th, mask_hidden=mask_hidden,
    )

    out2d = pl.pallas_call(
        kernel,
        out_shape=jax.ShapeDtypeStruct((rows, d), out_dtype),
        grid_spec=pltpu.PrefetchScalarGridSpec(
            num_scalar_prefetch=0,
            grid=(n_row_tiles, n_hidden_tiles),
            in_specs=[
                pl.BlockSpec((tm, d), lambda i, j: (i, 0)),   # x rows
                pl.BlockSpec((d, th), lambda i, j: (0, j)),   # w1 column tile
                pl.BlockSpec((d, th), lambda i, j: (0, j)),   # w3 column tile
                pl.BlockSpec((th, d), lambda i, j: (j, 0)),   # w2 row tile
            ],
            out_specs=pl.BlockSpec((tm, d), lambda i, j: (i, 0)),
            scratch_shapes=[pltpu.VMEM((tm, d), jnp.float32)],
        ),
        compiler_params=pltpu.CompilerParams(
            dimension_semantics=("parallel", "arbitrary"),
            vmem_limit_bytes=budget,
        ),
        cost_estimate=cost,
    )(xc, w1c, w3c, w2c)
    return out2d.reshape(orig_shape)


# --------------------------------------------------------------------------
# Test
# --------------------------------------------------------------------------
if __name__ == "__main__":

    def ref_ffn(x, w1, w3, w2):
        a = x @ w1
        return (jax.nn.silu(a) * (x @ w3)) @ w2

    def make_inputs(key, batch, seq, embed_dim):
        h_dim = 4 * embed_dim
        kx, k1, k2, k3 = jax.random.split(key, 4)
        # nn.Linear(in, out, bias=False) init: U(-1/sqrt(in), 1/sqrt(in)),
        # stored already transposed to (in, out) so the kernel does x @ w.
        lim1 = 1.0 / (embed_dim ** 0.5)
        lim2 = 1.0 / (h_dim ** 0.5)
        x = jax.random.normal(kx, (batch, seq, embed_dim), dtype=jnp.float32)
        w1 = jax.random.uniform(k1, (embed_dim, h_dim), jnp.float32, -lim1, lim1)
        w3 = jax.random.uniform(k3, (embed_dim, h_dim), jnp.float32, -lim1, lim1)
        w2 = jax.random.uniform(k2, (h_dim, embed_dim), jnp.float32, -lim2, lim2)
        return x, w1, w3, w2

    # 1) Main config (resident-weights path): batch=2, seq=8, embed_dim=32.
    x, w1, w3, w2 = make_inputs(jax.random.PRNGKey(0), 2, 8, 32)
    out = jax.block_until_ready(feedforward(x, w1, w3, w2))
    ref = ref_ffn(x, w1, w3, w2)
    assert out.shape == x.shape and out.dtype == x.dtype
    err = float(jnp.max(jnp.abs(out - ref)))
    assert jnp.allclose(out, ref, atol=2e-2, rtol=2e-2), f"resident err={err}"

    # 2) Tiled-hidden reduction path (2 exact hidden tiles).
    x, w1, w3, w2 = make_inputs(jax.random.PRNGKey(1), 2, 8, 64)
    out = jax.block_until_ready(
        feedforward(x, w1, w3, w2, hidden_tile=128, force_tiled=True))
    ref = ref_ffn(x, w1, w3, w2)
    err = float(jnp.max(jnp.abs(out - ref)))
    assert jnp.allclose(out, ref, atol=2e-2, rtol=2e-2), f"tiled err={err}"

    # 3) Tiled-hidden path with ragged (masked) hidden tail.
    x, w1, w3, w2 = make_inputs(jax.random.PRNGKey(2), 2, 8, 96)
    out = jax.block_until_ready(
        feedforward(x, w1, w3, w2, hidden_tile=256, force_tiled=True))
    ref = ref_ffn(x, w1, w3, w2)
    err = float(jnp.max(jnp.abs(out - ref)))
    assert jnp.allclose(out, ref, atol=2e-2, rtol=2e-2), f"masked err={err}"

    print("KERNEL_OK")
</pallas_src>

<mosaic_0001>
module attributes {stable_mosaic.version = 11 : i64} {
  func.func @_ffn_resident_kernel(%arg0: i32, %arg1: memref<16x32xbf16, #tpu.memory_space<vmem>>, %arg2: memref<32x128xbf16, #tpu.memory_space<vmem>>, %arg3: memref<32x128xbf16, #tpu.memory_space<vmem>>, %arg4: memref<128x32xbf16, #tpu.memory_space<vmem>>, %arg5: memref<16x32xf32, #tpu.memory_space<vmem>>) attributes {dimension_semantics = [#tpu.dimension_semantics<parallel>], iteration_bounds = array<i64: 1>, scalar_prefetch = 0 : i64, scratch_operands = 0 : i64, tpu.core_type = #tpu.core_type<tc>, window_params = [{transform_indices = @transform_0, window_bounds = array<i64: 16, 32>}, {pipeline_mode = #tpu.pipeline_mode<synchronous>, transform_indices = @transform_1, window_bounds = array<i64: 32, 128>}, {pipeline_mode = #tpu.pipeline_mode<synchronous>, transform_indices = @transform_2, window_bounds = array<i64: 32, 128>}, {pipeline_mode = #tpu.pipeline_mode<synchronous>, transform_indices = @transform_3, window_bounds = array<i64: 128, 32>}, {transform_indices = @transform_4, window_bounds = array<i64: 16, 32>}]} {
    %c0 = arith.constant 0 : index
    %c0_0 = arith.constant 0 : index
    %0 = vector.load %arg1[%c0, %c0_0] : memref<16x32xbf16, #tpu.memory_space<vmem>>, vector<16x32xbf16>
    %c0_1 = arith.constant 0 : index
    %c0_2 = arith.constant 0 : index
    %1 = vector.load %arg2[%c0_1, %c0_2] : memref<32x128xbf16, #tpu.memory_space<vmem>>, vector<32x128xbf16>
    %cst = arith.constant dense<0.000000e+00> : vector<16x128xf32>
    %2 = tpu.matmul %0, %1, %cst {dimension_numbers = #tpu.dot_dimension_numbers<[1], [0], [0], [1], [0, 0, 1, 1], [], []>} : vector<16x32xbf16>, vector<32x128xbf16>, vector<16x128xf32> -> vector<16x128xf32>
    %c0_3 = arith.constant 0 : index
    %c0_4 = arith.constant 0 : index
    %3 = vector.load %arg3[%c0_3, %c0_4] : memref<32x128xbf16, #tpu.memory_space<vmem>>, vector<32x128xbf16>
    %cst_5 = arith.constant dense<0.000000e+00> : vector<16x128xf32>
    %4 = tpu.matmul %0, %3, %cst_5 {dimension_numbers = #tpu.dot_dimension_numbers<[1], [0], [0], [1], [0, 0, 1, 1], [], []>} : vector<16x32xbf16>, vector<32x128xbf16>, vector<16x128xf32> -> vector<16x128xf32>
    %cst_6 = arith.constant 0.000000e+00 : f32
    %5 = vector.broadcast %cst_6 : f32 to vector<16x128xf32>
    %6 = arith.subf %5, %2 : vector<16x128xf32>
    %7 = math.exp %6 : vector<16x128xf32>
    %cst_7 = arith.constant 1.000000e+00 : f32
    %8 = vector.broadcast %cst_7 : f32 to vector<16x128xf32>
    %9 = arith.addf %8, %7 : vector<16x128xf32>
    %10 = tpu.reciprocal %9 {approx = true} : vector<16x128xf32> -> vector<16x128xf32>
    %11 = arith.mulf %2, %10 : vector<16x128xf32>
    %12 = arith.mulf %11, %4 : vector<16x128xf32>
    %13 = arith.truncf %12 : vector<16x128xf32> to vector<16x128xbf16>
    %c0_8 = arith.constant 0 : index
    %c0_9 = arith.constant 0 : index
    %14 = vector.load %arg4[%c0_8, %c0_9] : memref<128x32xbf16, #tpu.memory_space<vmem>>, vector<128x32xbf16>
    %cst_10 = arith.constant dense<0.000000e+00> : vector<16x32xf32>
    %15 = tpu.matmul %13, %14, %cst_10 {dimension_numbers = #tpu.dot_dimension_numbers<[1], [0], [0], [1], [0, 0, 1, 1], [], []>} : vector<16x128xbf16>, vector<128x32xbf16>, vector<16x32xf32> -> vector<16x32xf32>
    %c0_11 = arith.constant 0 : index
    %c0_12 = arith.constant 0 : index
    %16 = vector.load %arg5[%c0_11, %c0_12] : memref<16x32xf32, #tpu.memory_space<vmem>>, vector<16x32xf32>
    tpu.vector_store %arg5[%c0_11, %c0_12], %15 {strides = array<i32>} : memref<16x32xf32, #tpu.memory_space<vmem>>, vector<16x32xf32>,
    return
  }
  func.func @transform_0(%arg0: i32) -> (i32, i32) {
    %c0_i32 = arith.constant 0 : i32
    %c0_i32_0 = arith.constant 0 : i32
    return %arg0, %c0_i32 : i32, i32
  }
  func.func @transform_1(%arg0: i32) -> (i32, i32) {
    %c0_i32 = arith.constant 0 : i32
    %c0_i32_0 = arith.constant 0 : i32
    %c0_i32_1 = arith.constant 0 : i32
    return %c0_i32, %c0_i32_0 : i32, i32
  }
  func.func @transform_2(%arg0: i32) -> (i32, i32) {
    %c0_i32 = arith.constant 0 : i32
    %c0_i32_0 = arith.constant 0 : i32
    %c0_i32_1 = arith.constant 0 : i32
    return %c0_i32, %c0_i32_0 : i32, i32
  }
  func.func @transform_3(%arg0: i32) -> (i32, i32) {
    %c0_i32 = arith.constant 0 : i32
    %c0_i32_0 = arith.constant 0 : i32
    %c0_i32_1 = arith.constant 0 : i32
    return %c0_i32, %c0_i32_0 : i32, i32
  }
  func.func @transform_4(%arg0: i32) -> (i32, i32) {
    %c0_i32 = arith.constant 0 : i32
    %c0_i32_0 = arith.constant 0 : i32
    return %arg0, %c0_i32 : i32, i32
  }
}

</mosaic_0001>

<llo_original>
// kernel: tpu_custom_call.1
$region0: #{tpu_custom_call.1}
  #allocation0 [shape = 'u32[]', space=smem, size = 0x4, offset = 0x4, fixed_abs, tag = 'smem constant byte address 0x4 - core index']
  #allocation1 [shape = 'u32[144,128]{1,0:T(1,128)}', space=vmem, size = 0x12000, scoped, tag = 'internal scratch']
  %s0 = inlined_call_operand.vmem [shape: bf16[16,32], index: 0, kind: input, shape index: {}]
  %s1 = inlined_call_operand.vmem [shape: bf16[32,128], index: 1, kind: input, shape index: {}]
  %s2 = inlined_call_operand.vmem [shape: bf16[32,128], index: 2, kind: input, shape index: {}]
  %s3 = inlined_call_operand.vmem [shape: bf16[128,32], index: 3, kind: input, shape index: {}]
  %s4 = inlined_call_operand.hbm [shape: f32[16,32], index: 4, kind: output, shape index: {}]
  %s5 = sld [smem:[#allocation0]]
  $region26: #{tpu_custom_call.1} parent=0
    _
  %s7 = ssub.s32 1, %s5
  %s8 = scalar_select 0, %s7, %s5
  $region1: #{tpu_custom_call.1} parent=0
    #allocation2 [shape = 'u8[8192]{0}', space=vmem, size = 0x2000, scoped, tag = 'output window, operand 0, single buffered']
    #allocation3 [shape = 's32[1]{0}', space=sflag, size = 0x4, scoped, tag = 'scoped memory for tpu_custom_call.1']
    %9 = vsyncpa [#allocation3], 0
    // Predicated region
    $region2: #{tpu_custom_call.1} parent=1 // pred_check
      _
    $region3: #{tpu_custom_call.1} parent=1 // pred_check_branch
      %11 = sbr.rel (0) target = $region5
    $region4: #{tpu_custom_call.1} parent=1 // pred_region
      _
    $region5: #{tpu_custom_call.1} parent=1 // pred_fallthru
      _
    // Predicated region
    $region6: #{tpu_custom_call.1} parent=1 // pred_check
      _
    $region7: #{tpu_custom_call.1} parent=1 // pred_check_branch
      %13 = sbr.rel (0) target = $region9
    $region8: #{tpu_custom_call.1} parent=1 // pred_region
      _
    $region9: #{tpu_custom_call.1} parent=1 // pred_fallthru
      _
    // Predicated region
    $region10: #{tpu_custom_call.1} parent=1 // pred_check
      _
    $region11: #{tpu_custom_call.1} parent=1 // pred_check_branch
      %15 = sbr.rel (0) target = $region13
    $region12: #{tpu_custom_call.1} parent=1 // pred_region
      _
    $region13: #{tpu_custom_call.1} parent=1 // pred_fallthru
      _
    // Predicated region
    $region14: #{tpu_custom_call.1} parent=1 // pred_check
      _
    $region15: #{tpu_custom_call.1} parent=1 // pred_check_branch
      %17 = sbr.rel (0) target = $region17
    $region16: #{tpu_custom_call.1} parent=1 // pred_region
      _
    $region17: #{tpu_custom_call.1} parent=1 // pred_fallthru
      _
    %v19 = vld [vmem:[%s0] sm:$0xf]
    %v20 = vld [vmem:[%s0 + $0x4] sm:$0xf]
    %v21 = vld [vmem:[%s1] sm:$0xf]
    %v22 = vld [vmem:[%s1 + $0x4] sm:$0xf]
    %v23 = vld [vmem:[%s1 + $0x8] sm:$0xf]
    %v24 = vld [vmem:[%s1 + $0xc] sm:$0xf]
    %v27 = vunpack.c.l.b16 %v19
    %v28 = vunpack.c.l.b16 %v20
    %v29 = vpack.c.b16 %v28, %v27
    %v34 = vunpack.c.l.b16 %v21
    %v35 = vunpack.c.l.b16 %v22
    %v36 = vunpack.c.l.b16 %v23
    %v37 = vunpack.c.l.b16 %v24
    %v38 = vpack.c.b16 %v35, %v34
    %v39 = vpack.c.b16 %v37, %v36
    %vm42 = vcmask 261120
    %v44 = vsel %vm42, %v29, 0
    %46 = vmatprep.subr.bf16.mxu0 0
    %47 = vmatpush1.bf16.msra.mxu0 0
    %48 = vmatprep.subr.bf16.mxu0 0
    %49 = vmatpush1.bf16.msra.mxu0 0
    %50 = vmatprep.subr.bf16.mxu0 0
    %51 = vmatpush1.bf16.msra.mxu0 0
    %52 = vmatprep.subr.bf16.mxu0 0
    %53 = vmatpush1.bf16.msra.mxu0 0
    %54 = vmatprep.subr.bf16.mxu0 0
    %55 = vmatpush1.bf16.msra.mxu0 0
    %56 = vmatprep.subr.bf16.mxu0 0
    %57 = vmatpush1.bf16.msra.mxu0 0
    %58 = vmatprep.subr.bf16.mxu0 0
    %59 = vmatpush1.bf16.msra.mxu0 %v39
    %60 = vmatprep.subr.bf16.mxu0 0
    %61 = vmatpush1.bf16.msra.mxu0 %v38
    %62 = vmatprep.subr.bf16.mxu0 0
    %63 = vmatpush2.bf16.msra.mxu0 0
    %64 = vmatprep.subr.bf16.mxu0 0
    %65 = vmatpush2.bf16.msra.mxu0 0
    %66 = vmatprep.subr.bf16.mxu0 0
    %67 = vmatpush2.bf16.msra.mxu0 0
    %68 = vmatprep.subr.bf16.mxu0 0
    %69 = vmatpush2.bf16.msra.mxu0 0
    %70 = vmatprep.subr.bf16.mxu0 0
    %71 = vmatpush2.bf16.msra.mxu0 0
    %72 = vmatprep.subr.bf16.mxu0 0
    %73 = vmatpush2.bf16.msra.mxu0 0
    %74 = vmatprep.subr.bf16.mxu0 0
    %75 = vmatpush2.bf16.msra.mxu0 0
    %76 = vmatprep.subr.bf16.mxu0 0
    %77 = vmatpush2.bf16.msra.mxu0 0
    %78 = vmatprep.mubr.bf16.mxu0 0
    %79 = vmatmul.mubr.bf16.gmra.mxu0 %v44
    %v80 = vpop.f32.mrf.mxu0
    %v81 = vadd.f32 0.0, %v80
    %v82 = vpop.f32.mrf.mxu0
    %v83 = vpop.f32.mrf.mxu0
    %v84 = vadd.f32 0.0, %v83
    %v85 = vpop.f32.mrf.mxu0
    %86 = vdwg.mxu0
    %v87 = vld [vmem:[%s2] sm:$0xf]
    %v88 = vld [vmem:[%s2 + $0x4] sm:$0xf]
    %v89 = vld [vmem:[%s2 + $0x8] sm:$0xf]
    %v90 = vld [vmem:[%s2 + $0xc] sm:$0xf]
    %v95 = vunpack.c.l.b16 %v87
    %v96 = vunpack.c.l.b16 %v88
    %v97 = vunpack.c.l.b16 %v89
    %v98 = vunpack.c.l.b16 %v90
    %v99 = vpack.c.b16 %v96, %v95
    %v100 = vpack.c.b16 %v98, %v97
    %103 = vmatprep.subr.bf16.mxu0 0
    %104 = vmatpush1.bf16.msra.mxu0 0
    %105 = vmatprep.subr.bf16.mxu0 0
    %106 = vmatpush1.bf16.msra.mxu0 0
    %107 = vmatprep.subr.bf16.mxu0 0
    %108 = vmatpush1.bf16.msra.mxu0 0
    %109 = vmatprep.subr.bf16.mxu0 0
    %110 = vmatpush1.bf16.msra.mxu0 0
    %111 = vmatprep.subr.bf16.mxu0 0
    %112 = vmatpush1.bf16.msra.mxu0 0
    %113 = vmatprep.subr.bf16.mxu0 0
    %114 = vmatpush1.bf16.msra.mxu0 0
    %115 = vmatprep.subr.bf16.mxu0 0
    %116 = vmatpush1.bf16.msra.mxu0 %v100
    %117 = vmatprep.subr.bf16.mxu0 0
    %118 = vmatpush1.bf16.msra.mxu0 %v99
    %119 = vmatprep.subr.bf16.mxu0 0
    %120 = vmatpush2.bf16.msra.mxu0 0
    %121 = vmatprep.subr.bf16.mxu0 0
    %122 = vmatpush2.bf16.msra.mxu0 0
    %123 = vmatprep.subr.bf16.mxu0 0
    %124 = vmatpush2.bf16.msra.mxu0 0
    %125 = vmatprep.subr.bf16.mxu0 0
    %126 = vmatpush2.bf16.msra.mxu0 0
    %127 = vmatprep.subr.bf16.mxu0 0
    %128 = vmatpush2.bf16.msra.mxu0 0
    %129 = vmatprep.subr.bf16.mxu0 0
    %130 = vmatpush2.bf16.msra.mxu0 0
    %131 = vmatprep.subr.bf16.mxu0 0
    %132 = vmatpush2.bf16.msra.mxu0 0
    %133 = vmatprep.subr.bf16.mxu0 0
    %134 = vmatpush2.bf16.msra.mxu0 0
    %135 = vmatprep.mubr.bf16.mxu0 0
    %136 = vmatmul.mubr.bf16.gmra.mxu0 %v44
    %v137 = vpop.f32.mrf.mxu0
    %v138 = vadd.f32 0.0, %v137
    %v139 = vpop.f32.mrf.mxu0
    %v140 = vpop.f32.mrf.mxu0
    %v141 = vadd.f32 0.0, %v140
    %v142 = vpop.f32.mrf.mxu0
    %143 = vdwg.mxu0
    %v144 = vsub.f32 0.0, %v81
    %v145 = vsub.f32 0.0, %v84
    %v146 = vmul.f32 %v144, 1.442695
    %v147 = vpow.pop %v146
    %v148 = vmul.f32 %v145, 1.442695
    %v149 = vpow.pop %v148
    %v150 = vadd.f32 %v147, 1.0
    %v151 = vadd.f32 %v149, 1.0
    %v152 = vrcp.pop %v150
    %v153 = vrcp.pop %v151
    %v154 = vmul.f32 %v81, %v152
    %v155 = vmul.f32 %v84, %v153
    %v156 = vmul.f32 %v154, %v138
    %v157 = vmul.f32 %v155, %v141
    %v158 = vpack.c.bf16 %v157, %v156
    %v159 = vld [vmem:[%s3] sm:$0xf]
    %v160 = vld [vmem:[%s3 + $0x4] sm:$0xf]
    %v161 = vld [vmem:[%s3 + $0x8] sm:$0xf]
    %v162 = vld [vmem:[%s3 + $0xc] sm:$0xf]
    %v163 = vld [vmem:[%s3 + $0x10] sm:$0xf]
    %v164 = vld [vmem:[%s3 + $0x14] sm:$0xf]
    %v165 = vld [vmem:[%s3 + $0x18] sm:$0xf]
    %v166 = vld [vmem:[%s3 + $0x1c] sm:$0xf]
    %v167 = vld [vmem:[%s3 + $0x20] sm:$0xf]
    %v168 = vld [vmem:[%s3 + $0x24] sm:$0xf]
    %v169 = vld [vmem:[%s3 + $0x28] sm:$0xf]
    %v170 = vld [vmem:[%s3 + $0x2c] sm:$0xf]
    %v171 = vld [vmem:[%s3 + $0x30] sm:$0xf]
    %v172 = vld [vmem:[%s3 + $0x34] sm:$0xf]
    %v173 = vld [vmem:[%s3 + $0x38] sm:$0xf]
    %v174 = vld [vmem:[%s3 + $0x3c] sm:$0xf]
    %v191 = vunpack.c.l.b16 %v159
    %v192 = vunpack.c.l.b16 %v160
    %v193 = vunpack.c.l.b16 %v161
    %v194 = vunpack.c.l.b16 %v162
    %v195 = vunpack.c.l.b16 %v163
    %v196 = vunpack.c.l.b16 %v164
    %v197 = vunpack.c.l.b16 %v165
    %v198 = vunpack.c.l.b16 %v166
    %v199 = vunpack.c.l.b16 %v167
    %v200 = vunpack.c.l.b16 %v168
    %v201 = vunpack.c.l.b16 %v169
    %v202 = vunpack.c.l.b16 %v170
    %v203 = vunpack.c.l.b16 %v171
    %v204 = vunpack.c.l.b16 %v172
    %v205 = vunpack.c.l.b16 %v173
    %v206 = vunpack.c.l.b16 %v174
    %v207 = vpack.c.b16 %v192, %v191
    %v208 = vpack.c.b16 %v194, %v193
    %v209 = vpack.c.b16 %v196, %v195
    %v210 = vpack.c.b16 %v198, %v197
    %v211 = vpack.c.b16 %v200, %v199
    %v212 = vpack.c.b16 %v202, %v201
    %v213 = vpack.c.b16 %v204, %v203
    %v214 = vpack.c.b16 %v206, %v205
    %223 = vmatprep.subr.bf16.mxu0 0
    %224 = vmatpush1.bf16.msra.mxu0 %v214
    %225 = vmatprep.subr.bf16.mxu0 0
    %226 = vmatpush1.bf16.msra.mxu0 %v213
    %227 = vmatprep.subr.bf16.mxu0 0
    %228 = vmatpush1.bf16.msra.mxu0 %v212
    %229 = vmatprep.subr.bf16.mxu0 0
    %230 = vmatpush1.bf16.msra.mxu0 %v211
    %231 = vmatprep.subr.bf16.mxu0 0
    %232 = vmatpush1.bf16.msra.mxu0 %v210
    %233 = vmatprep.subr.bf16.mxu0 0
    %234 = vmatpush1.bf16.msra.mxu0 %v209
    %235 = vmatprep.subr.bf16.mxu0 0
    %236 = vmatpush1.bf16.msra.mxu0 %v208
    %237 = vmatprep.subr.bf16.mxu0 0
    %238 = vmatpush1.bf16.msra.mxu0 %v207
    %239 = vmatprep.subr.bf16.mxu0 0
    %240 = vmatpush2.bf16.msra.mxu0 0
    %241 = vmatprep.subr.bf16.mxu0 0
    %242 = vmatpush2.bf16.msra.mxu0 0
    %243 = vmatprep.subr.bf16.mxu0 0
    %244 = vmatpush2.bf16.msra.mxu0 0
    %245 = vmatprep.subr.bf16.mxu0 0
    %246 = vmatpush2.bf16.msra.mxu0 0
    %247 = vmatprep.subr.bf16.mxu0 0
    %248 = vmatpush2.bf16.msra.mxu0 0
    %249 = vmatprep.subr.bf16.mxu0 0
    %250 = vmatpush2.bf16.msra.mxu0 0
    %251 = vmatprep.subr.bf16.mxu0 0
    %252 = vmatpush2.bf16.msra.mxu0 0
    %253 = vmatprep.subr.bf16.mxu0 0
    %254 = vmatpush2.bf16.msra.mxu0 0
    %255 = vmatprep.mubr.bf16.mxu0 0
    %256 = vmatmul.mubr.bf16.gmra.mxu0 %v158
    %v257 = vpop.f32.mrf.mxu0
    %v258 = vadd.f32 0.0, %v257
    %v259 = vpop.f32.mrf.mxu0
    %v260 = vpop.f32.mrf.mxu0
    %v261 = vadd.f32 0.0, %v260
    %v262 = vpop.f32.mrf.mxu0
    %263 = vdwg.mxu0
    %264 = vst.msk [vmem:[#allocation2] sm:$0xff] %vm42, %v258
    %265 = vst.msk [vmem:[#allocation2 + $0x8] sm:$0xff] %vm42, %v261
    // Predicated region
    $region18: #{tpu_custom_call.1} parent=1 // pred_check
      _
    $region19: #{tpu_custom_call.1} parent=1 // pred_check_branch
      %267 = sbr.rel (0) target = $region21
    $region20: #{tpu_custom_call.1} parent=1 // pred_region
      %s269 = ssub.s32 256, 256
      %270 = vsyncadd [#allocation3], %s269
      %s271 = sshll.u32 [#allocation2], 4
      %s272 = int_to_ptr.vmem [resolvable:$true] %s271
      %277 = dma.vmem_to_hbm [thread:$0]  %s272, 256, %s4, [#allocation3], 128, 128, 8
    $region21: #{tpu_custom_call.1} parent=1 // pred_fallthru
      _
    // Predicated region
    $region22: #{tpu_custom_call.1} parent=1 // pred_check
      _
    $region23: #{tpu_custom_call.1} parent=1 // pred_check_branch
      %279 = sbr.rel (0) target = $region25
    $region24: #{tpu_custom_call.1} parent=1 // pred_region
      %280 = dma.done [#allocation3], 256
    $region25: #{tpu_custom_call.1} parent=1 // pred_fallthru
      _
    %281 = vsyncpa [#allocation3], 1

</llo_original>
